<compile_context>
chip_gen: v7x
topology: tpu7x:2x2x1
jax: 0.10.0
libtpu: 0.0.40
codegen_flags: <defaults>
</compile_context>

<pallas_src>
import functools

import jax
import jax.numpy as jnp
from jax.experimental import pallas as pl
from jax.experimental.pallas import tpu as pltpu


def _gem_kernel(p_ref, x_ref, o_ref, *, eps, inv_l, static_p):
    # p_ref: (1,) f32 scalar in SMEM (ignored when static_p is not None)
    # x_ref: (tile_rows, L) input tile in VMEM (native dtype)
    # o_ref: (1, tile_rows) lane-dense output tile
    x = jnp.maximum(x_ref[...].astype(jnp.float32), eps)  # clamp(min=eps), x > 0

    if static_p is not None:
        sp = float(static_p)
        if sp == int(sp) and 1 <= int(sp) <= 16:
            # VPU-only integer power (common case p=3): no EUP work per element.
            xp = x
            for _ in range(int(sp) - 1):
                xp = xp * x
        else:
            xp = jnp.exp(jnp.log(x) * sp)
        inv_p = 1.0 / sp
    else:
        p = p_ref[0]
        xp = jnp.exp(jnp.log(x) * p)   # x^p for traced (trainable) p
        inv_p = 1.0 / p

    # Row sums produced lane-dense via the MXU:
    #   ones(8, L) . xp(T, L)^T -> (8, T); all 8 rows are identical.
    ones = jnp.ones((8, xp.shape[1]), jnp.float32)
    sums = jnp.einsum("sl,rl->sr", ones, xp,
                      preferred_element_type=jnp.float32)      # (8, tile_rows)
    m = sums[0:1, :] * inv_l                                    # mean over H*W
    # m^(1/p); m > 0 since x >= eps > 0.  Only tile_rows elements -> cheap.
    o_ref[...] = jnp.exp(jnp.log(m) * inv_p).astype(o_ref.dtype)


def _pick_tile_rows(R, L):
    """Pick a row-tile size (multiple of 128) for the (R, L) flattened input."""
    # ~1M f32-equivalent elements per tile (~4 MiB of f32 working set) keeps the
    # double-buffered raw input plus in-kernel f32 temporaries well under the
    # 32 MiB scoped-VMEM limit requested below, on every TPU generation.
    target_elems = 1 << 20
    rows = max(128, (target_elems // max(L, 1)) // 128 * 128)
    r_ceil = ((R + 127) // 128) * 128
    rows = min(rows, r_ceil)
    # On big problems keep >= ~8 grid steps so the DMA pipeline stays primed
    # and the grid can be split across TensorCores (v7x megacore).
    if r_ceil >= 8 * 128 and r_ceil // rows < 8:
        rows = max(128, (r_ceil // 8) // 128 * 128)
    return rows


def gem_pallas(x, p, eps=1e-6, tile_rows=None):
    """x: (N, C, H, W); p: trainable (1,) array OR static Python number.

    Returns (N, C, 1, 1), matching F.avg_pool2d(clamp(x,eps)^p, (H,W))^(1/p).
    """
    N, C, H, W = x.shape
    R, L = N * C, H * W
    x2 = x.reshape(R, L)

    if tile_rows is None:
        tile_rows = _pick_tile_rows(R, L)

    # Pad rows up to a multiple of tile_rows (pad value 1.0 is benign: >= eps,
    # finite under log; padded rows are sliced off below).
    R_pad = ((R + tile_rows - 1) // tile_rows) * tile_rows
    if R_pad != R:
        x2 = jnp.pad(x2, ((0, R_pad - R), (0, 0)), constant_values=1.0)

    if isinstance(p, (int, float)):
        static_p = float(p)
        p_arr = jnp.full((1,), static_p, dtype=jnp.float32)   # passed but unused
    else:
        static_p = None
        p_arr = jnp.asarray(p, dtype=jnp.float32).reshape(1)

    grid = (R_pad // tile_rows,)
    out = pl.pallas_call(
        functools.partial(_gem_kernel, eps=float(eps), inv_l=1.0 / L,
                          static_p=static_p),
        out_shape=jax.ShapeDtypeStruct((1, R_pad), x.dtype),
        grid=grid,
        in_specs=[
            pl.BlockSpec(memory_space=pltpu.MemorySpace.SMEM),   # p scalar
            pl.BlockSpec((tile_rows, L), lambda i: (i, 0)),      # input rows
        ],
        out_specs=pl.BlockSpec((1, tile_rows), lambda i: (0, i)),  # lane-dense
        compiler_params=pltpu.CompilerParams(
            dimension_semantics=("parallel",),
            vmem_limit_bytes=32 * 1024 * 1024,
        ),
    )(p_arr, x2)

    return out[0, :R].reshape(N, C, 1, 1)


def gem_ref(x, p, eps=1e-6):
    """Pure-JAX reference matching F.avg_pool2d(clamp(x,eps)^p, (H,W))^(1/p)."""
    p0 = jnp.asarray(p, dtype=jnp.float32).reshape(-1)[0]
    xp = jnp.power(jnp.maximum(x, eps).astype(jnp.float32), p0)
    m = jnp.mean(xp, axis=(-2, -1), keepdims=True)
    return jnp.power(m, 1.0 / p0).astype(x.dtype)


if __name__ == "__main__":
    key = jax.random.PRNGKey(0)
    N, C, H, W = 2, 4, 16, 16
    x = jax.random.uniform(key, (N, C, H, W), dtype=jnp.float32)
    eps = 1e-6

    # Trainable-p path (module default: self.p = Parameter(torch.ones(1) * 3)).
    p_param = jnp.ones((1,), dtype=jnp.float32) * 3.0
    out = jax.block_until_ready(gem_pallas(x, p_param, eps=eps))
    ref = gem_ref(x, p_param, eps=eps)
    assert out.shape == (N, C, 1, 1), out.shape
    assert jnp.allclose(out, ref, rtol=1e-4, atol=1e-5), (
        f"max abs diff {jnp.max(jnp.abs(out - ref))}")

    # Static-p fast path (p_trainable=False): VPU-only x*x*x, no per-element EUP.
    out_s = jax.block_until_ready(gem_pallas(x, 3, eps=eps))
    assert out_s.shape == (N, C, 1, 1), out_s.shape
    assert jnp.allclose(out_s, ref, rtol=1e-4, atol=1e-5), (
        f"max abs diff {jnp.max(jnp.abs(out_s - ref))}")

    print("KERNEL_OK")
</pallas_src>

<mosaic_0001>
module attributes {stable_mosaic.version = 11 : i64} {
  func.func @_gem_kernel(%arg0: i32, %arg1: memref<1xf32, #tpu.memory_space<smem>>, %arg2: memref<128x256xf32, #tpu.memory_space<vmem>>, %arg3: memref<1x128xf32, #tpu.memory_space<vmem>>) attributes {dimension_semantics = [#tpu.dimension_semantics<parallel>], iteration_bounds = array<i64: 1>, scalar_prefetch = 0 : i64, scratch_operands = 0 : i64, tpu.core_type = #tpu.core_type<tc>, window_params = [{transform_indices = @transform_0, window_bounds = array<i64: 1>}, {transform_indices = @transform_1, window_bounds = array<i64: 128, 256>}, {transform_indices = @transform_2, window_bounds = array<i64: 1, 128>}]} {
    %c0 = arith.constant 0 : index
    %c0_0 = arith.constant 0 : index
    %0 = vector.load %arg2[%c0, %c0_0] : memref<128x256xf32, #tpu.memory_space<vmem>>, vector<128x256xf32>
    %cst = arith.constant 9.99999997E-7 : f32
    %1 = vector.broadcast %cst : f32 to vector<128x256xf32>
    %2 = arith.maximumf %0, %1 : vector<128x256xf32>
    %c0_1 = arith.constant 0 : index
    %3 = memref.load %arg1[%c0_1] : memref<1xf32, #tpu.memory_space<smem>>
    %4 = math.log %2 : vector<128x256xf32>
    %5 = vector.broadcast %3 : f32 to vector<128x256xf32>
    %6 = arith.mulf %4, %5 : vector<128x256xf32>
    %7 = math.exp %6 : vector<128x256xf32>
    %cst_2 = arith.constant 1.000000e+00 : f32
    %8 = arith.divf %cst_2, %3 : f32
    %cst_3 = arith.constant 1.000000e+00 : f32
    %9 = vector.broadcast %cst_3 : f32 to vector<8x256xf32>
    "tpu.trace_start"() <{level = 10 : i32, message = "sl,rl->sr"}> : () -> ()
    %cst_4 = arith.constant dense<0.000000e+00> : vector<8x128xf32>
    %10 = tpu.matmul %9, %7, %cst_4 {dimension_numbers = #tpu.dot_dimension_numbers<[1], [1], [0], [0], [0, 0, 1, 0], [], []>} : vector<8x256xf32>, vector<128x256xf32>, vector<8x128xf32> -> vector<8x128xf32>
    "tpu.trace_stop"() : () -> ()
    %11 = vector.extract_strided_slice %10 {offsets = [0, 0], sizes = [1, 128], strides = [1, 1]} : vector<8x128xf32> to vector<1x128xf32>
    %cst_5 = arith.constant 3.906250e-03 : f32
    %12 = vector.broadcast %cst_5 : f32 to vector<1x128xf32>
    %13 = arith.mulf %11, %12 : vector<1x128xf32>
    %14 = math.log %13 : vector<1x128xf32>
    %15 = vector.broadcast %8 : f32 to vector<1x128xf32>
    %16 = arith.mulf %14, %15 : vector<1x128xf32>
    %17 = math.exp %16 : vector<1x128xf32>
    %c0_6 = arith.constant 0 : index
    %c0_7 = arith.constant 0 : index
    %18 = vector.load %arg3[%c0_6, %c0_7] : memref<1x128xf32, #tpu.memory_space<vmem>>, vector<1x128xf32>
    tpu.vector_store %arg3[%c0_6, %c0_7], %17 {strides = array<i32>} : memref<1x128xf32, #tpu.memory_space<vmem>>, vector<1x128xf32>,
    return
  }
  func.func @transform_0(%arg0: i32) -> i32 {
    %c0_i32 = arith.constant 0 : i32
    %c0_i32_0 = arith.constant 0 : i32
    return %c0_i32 : i32
  }
  func.func @transform_1(%arg0: i32) -> (i32, i32) {
    %c0_i32 = arith.constant 0 : i32
    %c0_i32_0 = arith.constant 0 : i32
    return %arg0, %c0_i32 : i32, i32
  }
  func.func @transform_2(%arg0: i32) -> (i32, i32) {
    %c0_i32 = arith.constant 0 : i32
    %c0_i32_0 = arith.constant 0 : i32
    return %c0_i32, %arg0 : i32, i32
  }
}

</mosaic_0001>

<llo_original>
// kernel: tpu_custom_call.1
$region0: #{tpu_custom_call.1}
  #allocation0 [shape = 'u32[]', space=smem, size = 0x4, offset = 0x4, fixed_abs, tag = 'smem constant byte address 0x4 - core index']
  #allocation1 [shape = 'u32[144,128]{1,0:T(1,128)}', space=vmem, size = 0x12000, scoped, tag = 'internal scratch']
  #allocation2 [shape = 'f32[1]{0:T(128)S(6)}', space=smem, size = 0x200, scoped, tag = 'scoped memory for tpu_custom_call.1']
  %s0 = inlined_call_operand.<no memory space> [shape: f32[1], index: 0, kind: input, shape index: {}]
  %s1 = inlined_call_operand.hbm [shape: f32[128,256], index: 1, kind: input, shape index: {}]
  %s2 = inlined_call_operand.hbm [shape: f32[1,128], index: 2, kind: output, shape index: {}]
  %s3 = sld [smem:[#allocation0]]
  $region22: #{tpu_custom_call.1} parent=0
    _
  %s5 = ssub.s32 1, %s3
  %s6 = scalar_select 0, %s5, %s3
  %7 = sst [smem:[#allocation2]] %s0
  $region1: #{tpu_custom_call.1} parent=0
    #allocation3 [shape = 'u8[131072]{0}', space=vmem, size = 0x20000, scoped, tag = 'input window, operand 1, single buffered']
    #allocation4 [shape = 's32[1]{0}', space=sflag, size = 0x4, scoped, tag = 'scoped memory for tpu_custom_call.1']
    #allocation5 [shape = 's32[1]{0}', space=sflag, size = 0x4, scoped, tag = 'scoped memory for tpu_custom_call.1']
    #allocation6 [shape = 'u8[512]{0}', space=vmem, size = 0x400, scoped, tag = 'output window, operand 0, single buffered']
    %8 = vsyncpa [#allocation4], 0
    %9 = vsyncpa [#allocation5], 0
    // Predicated region
    $region2: #{tpu_custom_call.1} parent=1 // pred_check
      _
    $region3: #{tpu_custom_call.1} parent=1 // pred_check_branch
      %11 = sbr.rel (0) target = $region5
    $region4: #{tpu_custom_call.1} parent=1 // pred_region
      _
    $region5: #{tpu_custom_call.1} parent=1 // pred_fallthru
      _
    // Predicated region
    $region6: #{tpu_custom_call.1} parent=1 // pred_check
      _
    $region7: #{tpu_custom_call.1} parent=1 // pred_check_branch
      %13 = sbr.rel (0) target = $region9
    $region8: #{tpu_custom_call.1} parent=1 // pred_region
      %s15 = ssub.s32 4096, 4096
      %16 = vsyncadd [#allocation4], %s15
      %s17 = sshll.u32 [#allocation3], 4
      %s18 = int_to_ptr.vmem [resolvable:$true] %s17
      %23 = dma.hbm_to_vmem [thread:$0]  %s1, 4096, %s18, [#allocation4], 256, 256, 16
    $region9: #{tpu_custom_call.1} parent=1 // pred_fallthru
      _
    // Predicated region
    $region10: #{tpu_custom_call.1} parent=1 // pred_check
      _
    $region11: #{tpu_custom_call.1} parent=1 // pred_check_branch
      %25 = sbr.rel (0) target = $region13
    $region12: #{tpu_custom_call.1} parent=1 // pred_region
      %26 = dma.done [#allocation4], 4096
    $region13: #{tpu_custom_call.1} parent=1 // pred_fallthru
      _
    %v27 = vld [vmem:[#allocation3] sm:$0xff]
    %v28 = vld [vmem:[#allocation3 + $0x8] sm:$0xff]
    %v29 = vld [vmem:[#allocation3 + $0x10] sm:$0xff]
    %v30 = vld [vmem:[#allocation3 + $0x18] sm:$0xff]
    %v31 = vld [vmem:[#allocation3 + $0x20] sm:$0xff]
    %v32 = vld [vmem:[#allocation3 + $0x28] sm:$0xff]
    %v33 = vld [vmem:[#allocation3 + $0x30] sm:$0xff]
    %v34 = vld [vmem:[#allocation3 + $0x38] sm:$0xff]
    %v35 = vld [vmem:[#allocation3 + $0x40] sm:$0xff]
    %v36 = vld [vmem:[#allocation3 + $0x48] sm:$0xff]
    %v37 = vld [vmem:[#allocation3 + $0x50] sm:$0xff]
    %v38 = vld [vmem:[#allocation3 + $0x58] sm:$0xff]
    %v39 = vld [vmem:[#allocation3 + $0x60] sm:$0xff]
    %v40 = vld [vmem:[#allocation3 + $0x68] sm:$0xff]
    %v41 = vld [vmem:[#allocation3 + $0x70] sm:$0xff]
    %v42 = vld [vmem:[#allocation3 + $0x78] sm:$0xff]
    %v43 = vld [vmem:[#allocation3 + $0x80] sm:$0xff]
    %v44 = vld [vmem:[#allocation3 + $0x88] sm:$0xff]
    %v45 = vld [vmem:[#allocation3 + $0x90] sm:$0xff]
    %v46 = vld [vmem:[#allocation3 + $0x98] sm:$0xff]
    %v47 = vld [vmem:[#allocation3 + $0xa0] sm:$0xff]
    %v48 = vld [vmem:[#allocation3 + $0xa8] sm:$0xff]
    %v49 = vld [vmem:[#allocation3 + $0xb0] sm:$0xff]
    %v50 = vld [vmem:[#allocation3 + $0xb8] sm:$0xff]
    %v51 = vld [vmem:[#allocation3 + $0xc0] sm:$0xff]
    %v52 = vld [vmem:[#allocation3 + $0xc8] sm:$0xff]
    %v53 = vld [vmem:[#allocation3 + $0xd0] sm:$0xff]
    %v54 = vld [vmem:[#allocation3 + $0xd8] sm:$0xff]
    %v55 = vld [vmem:[#allocation3 + $0xe0] sm:$0xff]
    %v56 = vld [vmem:[#allocation3 + $0xe8] sm:$0xff]
    %v57 = vld [vmem:[#allocation3 + $0xf0] sm:$0xff]
    %v58 = vld [vmem:[#allocation3 + $0xf8] sm:$0xff]
    %v59 = vmax.f32 %v27, 1e-06
    %v60 = vmax.f32 %v28, 1e-06
    %v61 = vmax.f32 %v29, 1e-06
    %v62 = vmax.f32 %v30, 1e-06
    %v63 = vmax.f32 %v31, 1e-06
    %v64 = vmax.f32 %v32, 1e-06
    %v65 = vmax.f32 %v33, 1e-06
    %v66 = vmax.f32 %v34, 1e-06
    %v67 = vmax.f32 %v35, 1e-06
    %v68 = vmax.f32 %v36, 1e-06
    %v69 = vmax.f32 %v37, 1e-06
    %v70 = vmax.f32 %v38, 1e-06
    %v71 = vmax.f32 %v39, 1e-06
    %v72 = vmax.f32 %v40, 1e-06
    %v73 = vmax.f32 %v41, 1e-06
    %v74 = vmax.f32 %v42, 1e-06
    %v75 = vmax.f32 %v43, 1e-06
    %v76 = vmax.f32 %v44, 1e-06
    %v77 = vmax.f32 %v45, 1e-06
    %v78 = vmax.f32 %v46, 1e-06
    %v79 = vmax.f32 %v47, 1e-06
    %v80 = vmax.f32 %v48, 1e-06
    %v81 = vmax.f32 %v49, 1e-06
    %v82 = vmax.f32 %v50, 1e-06
    %v83 = vmax.f32 %v51, 1e-06
    %v84 = vmax.f32 %v52, 1e-06
    %v85 = vmax.f32 %v53, 1e-06
    %v86 = vmax.f32 %v54, 1e-06
    %v87 = vmax.f32 %v55, 1e-06
    %v88 = vmax.f32 %v56, 1e-06
    %v89 = vmax.f32 %v57, 1e-06
    %v90 = vmax.f32 %v58, 1e-06
    %s91 = sld [smem:[#allocation2]]
    %v92 = vlog2.pop %v59
    %v93 = vmul.f32 %v92, 0.6931472
    %v94 = vlog2.pop %v60
    %v95 = vmul.f32 %v94, 0.6931472
    %v96 = vlog2.pop %v61
    %v97 = vmul.f32 %v96, 0.6931472
    %v98 = vlog2.pop %v62
    %v99 = vmul.f32 %v98, 0.6931472
    %v100 = vlog2.pop %v63
    %v101 = vmul.f32 %v100, 0.6931472
    %v102 = vlog2.pop %v64
    %v103 = vmul.f32 %v102, 0.6931472
    %v104 = vlog2.pop %v65
    %v105 = vmul.f32 %v104, 0.6931472
    %v106 = vlog2.pop %v66
    %v107 = vmul.f32 %v106, 0.6931472
    %v108 = vlog2.pop %v67
    %v109 = vmul.f32 %v108, 0.6931472
    %v110 = vlog2.pop %v68
    %v111 = vmul.f32 %v110, 0.6931472
    %v112 = vlog2.pop %v69
    %v113 = vmul.f32 %v112, 0.6931472
    %v114 = vlog2.pop %v70
    %v115 = vmul.f32 %v114, 0.6931472
    %v116 = vlog2.pop %v71
    %v117 = vmul.f32 %v116, 0.6931472
    %v118 = vlog2.pop %v72
    %v119 = vmul.f32 %v118, 0.6931472
    %v120 = vlog2.pop %v73
    %v121 = vmul.f32 %v120, 0.6931472
    %v122 = vlog2.pop %v74
    %v123 = vmul.f32 %v122, 0.6931472
    %v124 = vlog2.pop %v75
    %v125 = vmul.f32 %v124, 0.6931472
    %v126 = vlog2.pop %v76
    %v127 = vmul.f32 %v126, 0.6931472
    %v128 = vlog2.pop %v77
    %v129 = vmul.f32 %v128, 0.6931472
    %v130 = vlog2.pop %v78
    %v131 = vmul.f32 %v130, 0.6931472
    %v132 = vlog2.pop %v79
    %v133 = vmul.f32 %v132, 0.6931472
    %v134 = vlog2.pop %v80
    %v135 = vmul.f32 %v134, 0.6931472
    %v136 = vlog2.pop %v81
    %v137 = vmul.f32 %v136, 0.6931472
    %v138 = vlog2.pop %v82
    %v139 = vmul.f32 %v138, 0.6931472
    %v140 = vlog2.pop %v83
    %v141 = vmul.f32 %v140, 0.6931472
    %v142 = vlog2.pop %v84
    %v143 = vmul.f32 %v142, 0.6931472
    %v144 = vlog2.pop %v85
    %v145 = vmul.f32 %v144, 0.6931472
    %v146 = vlog2.pop %v86
    %v147 = vmul.f32 %v146, 0.6931472
    %v148 = vlog2.pop %v87
    %v149 = vmul.f32 %v148, 0.6931472
    %v150 = vlog2.pop %v88
    %v151 = vmul.f32 %v150, 0.6931472
    %v152 = vlog2.pop %v89
    %v153 = vmul.f32 %v152, 0.6931472
    %v154 = vlog2.pop %v90
    %v155 = vmul.f32 %v154, 0.6931472
    %v156 = vstv %s91
    %v157 = vmul.f32 %v93, %v156
    %v158 = vmul.f32 %v95, %v156
    %v159 = vmul.f32 %v97, %v156
    %v160 = vmul.f32 %v99, %v156
    %v161 = vmul.f32 %v101, %v156
    %v162 = vmul.f32 %v103, %v156
    %v163 = vmul.f32 %v105, %v156
    %v164 = vmul.f32 %v107, %v156
    %v165 = vmul.f32 %v109, %v156
    %v166 = vmul.f32 %v111, %v156
    %v167 = vmul.f32 %v113, %v156
    %v168 = vmul.f32 %v115, %v156
    %v169 = vmul.f32 %v117, %v156
    %v170 = vmul.f32 %v119, %v156
    %v171 = vmul.f32 %v121, %v156
    %v172 = vmul.f32 %v123, %v156
    %v173 = vmul.f32 %v125, %v156
    %v174 = vmul.f32 %v127, %v156
    %v175 = vmul.f32 %v129, %v156
    %v176 = vmul.f32 %v131, %v156
    %v177 = vmul.f32 %v133, %v156
    %v178 = vmul.f32 %v135, %v156
    %v179 = vmul.f32 %v137, %v156
    %v180 = vmul.f32 %v139, %v156
    %v181 = vmul.f32 %v141, %v156
    %v182 = vmul.f32 %v143, %v156
    %v183 = vmul.f32 %v145, %v156
    %v184 = vmul.f32 %v147, %v156
    %v185 = vmul.f32 %v149, %v156
    %v186 = vmul.f32 %v151, %v156
    %v187 = vmul.f32 %v153, %v156
    %v188 = vmul.f32 %v155, %v156
    %v189 = vmul.f32 %v157, 1.442695
    %v190 = vpow.pop %v189
    %v191 = vmul.f32 %v158, 1.442695
    %v192 = vpow.pop %v191
    %v193 = vmul.f32 %v159, 1.442695
    %v194 = vpow.pop %v193
    %v195 = vmul.f32 %v160, 1.442695
    %v196 = vpow.pop %v195
    %v197 = vmul.f32 %v161, 1.442695
    %v198 = vpow.pop %v197
    %v199 = vmul.f32 %v162, 1.442695
    %v200 = vpow.pop %v199
    %v201 = vmul.f32 %v163, 1.442695
    %v202 = vpow.pop %v201
    %v203 = vmul.f32 %v164, 1.442695
    %v204 = vpow.pop %v203
    %v205 = vmul.f32 %v165, 1.442695
    %v206 = vpow.pop %v205
    %v207 = vmul.f32 %v166, 1.442695
    %v208 = vpow.pop %v207
    %v209 = vmul.f32 %v167, 1.442695
    %v210 = vpow.pop %v209
    %v211 = vmul.f32 %v168, 1.442695
    %v212 = vpow.pop %v211
    %v213 = vmul.f32 %v169, 1.442695
    %v214 = vpow.pop %v213
    %v215 = vmul.f32 %v170, 1.442695
    %v216 = vpow.pop %v215
    %v217 = vmul.f32 %v171, 1.442695
    %v218 = vpow.pop %v217
    %v219 = vmul.f32 %v172, 1.442695
    %v220 = vpow.pop %v219
    %v221 = vmul.f32 %v173, 1.442695
    %v222 = vpow.pop %v221
    %v223 = vmul.f32 %v174, 1.442695
    %v224 = vpow.pop %v223
    %v225 = vmul.f32 %v175, 1.442695
    %v226 = vpow.pop %v225
    %v227 = vmul.f32 %v176, 1.442695
    %v228 = vpow.pop %v227
    %v229 = vmul.f32 %v177, 1.442695
    %v230 = vpow.pop %v229
    %v231 = vmul.f32 %v178, 1.442695
    %v232 = vpow.pop %v231
    %v233 = vmul.f32 %v179, 1.442695
    %v234 = vpow.pop %v233
    %v235 = vmul.f32 %v180, 1.442695
    %v236 = vpow.pop %v235
    %v237 = vmul.f32 %v181, 1.442695
    %v238 = vpow.pop %v237
    %v239 = vmul.f32 %v182, 1.442695
    %v240 = vpow.pop %v239
    %v241 = vmul.f32 %v183, 1.442695
    %v242 = vpow.pop %v241
    %v243 = vmul.f32 %v184, 1.442695
    %v244 = vpow.pop %v243
    %v245 = vmul.f32 %v185, 1.442695
    %v246 = vpow.pop %v245
    %v247 = vmul.f32 %v186, 1.442695
    %v248 = vpow.pop %v247
    %v249 = vmul.f32 %v187, 1.442695
    %v250 = vpow.pop %v249
    %v251 = vmul.f32 %v188, 1.442695
    %v252 = vpow.pop %v251
    %v253 = vstv %s91
    %v254 = vrcp.pop %v253
    %s255 = vtos %v254
    %256 = vmatprep.subr.mxu0 %v192
    %257 = vmatpush1.xpose.msra.mxu0 %v190
    %258 = vmatprep.subr.mxu0 %v196
    %259 = vmatpush1.xpose.msra.mxu0 %v194
    %260 = vmatprep.subr.mxu0 %v200
    %261 = vmatpush1.xpose.msra.mxu0 %v198
    %262 = vmatprep.subr.mxu0 %v204
    %263 = vmatpush1.xpose.msra.mxu0 %v202
    %264 = vmatprep.subr.mxu0 %v208
    %265 = vmatpush1.xpose.msra.mxu0 %v206
    %266 = vmatprep.subr.mxu0 %v212
    %267 = vmatpush1.xpose.msra.mxu0 %v210
    %268 = vmatprep.subr.mxu0 %v216
    %269 = vmatpush1.xpose.msra.mxu0 %v214
    %270 = vmatprep.subr.mxu0 %v220
    %271 = vmatpush1.xpose.msra.mxu0 %v218
    %272 = vmatprep.subr.mxu0 %v224
    %273 = vmatpush1.xpose.msra.mxu0 %v222
    %274 = vmatprep.subr.mxu0 %v228
    %275 = vmatpush1.xpose.msra.mxu0 %v226
    %276 = vmatprep.subr.mxu0 %v232
    %277 = vmatpush1.xpose.msra.mxu0 %v230
    %278 = vmatprep.subr.mxu0 %v236
    %279 = vmatpush1.xpose.msra.mxu0 %v234
    %280 = vmatprep.subr.mxu0 %v240
    %281 = vmatpush1.xpose.msra.mxu0 %v238
    %282 = vmatprep.subr.mxu0 %v244
    %283 = vmatpush1.xpose.msra.mxu0 %v242
    %284 = vmatprep.subr.mxu0 %v248
    %285 = vmatpush1.xpose.msra.mxu0 %v246
    %286 = vmatprep.subr.mxu0 %v252
    %287 = vmatpush1.xpose.msra.mxu0 %v250
    %288 = vmatprep.subr.mxu0 0.0
    %289 = vmatpush1.xpose.msra.mxu0 0.0
    %290 = vmatprep.subr.mxu0 0.0
    %291 = vmatpush1.xpose.msra.mxu0 0.0
    %292 = vmatprep.subr.mxu0 0.0
    %293 = vmatpush1.xpose.msra.mxu0 0.0
    %294 = vmatprep.subr.mxu0 0.0
    %295 = vmatpush1.xpose.msra.mxu0 0.0
    %296 = vmatprep.subr.mxu0 0.0
    %297 = vmatpush1.xpose.msra.mxu0 0.0
    %298 = vmatprep.subr.mxu0 0.0
    %299 = vmatpush1.xpose.msra.mxu0 0.0
    %300 = vmatprep.subr.mxu0 0.0
    %301 = vmatpush1.xpose.msra.mxu0 0.0
    %302 = vmatprep.subr.mxu0 0.0
    %303 = vmatpush1.xpose.msra.mxu0 0.0
    %304 = vmatprep.subr.mxu0 0.0
    %305 = vmatpush1.xpose.msra.mxu0 0.0
    %306 = vmatprep.subr.mxu0 0.0
    %307 = vmatpush1.xpose.msra.mxu0 0.0
    %308 = vmatprep.subr.mxu0 0.0
    %309 = vmatpush1.xpose.msra.mxu0 0.0
    %310 = vmatprep.subr.mxu0 0.0
    %311 = vmatpush1.xpose.msra.mxu0 0.0
    %312 = vmatprep.subr.mxu0 0.0
    %313 = vmatpush1.xpose.msra.mxu0 0.0
    %314 = vmatprep.subr.mxu0 0.0
    %315 = vmatpush1.xpose.msra.mxu0 0.0
    %316 = vmatprep.subr.mxu0 0.0
    %317 = vmatpush1.xpose.msra.mxu0 0.0
    %318 = vmatprep.subr.mxu0 0.0
    %319 = vmatpush1.xpose.msra.mxu0 0.0
    %320 = vmatprep.mubr.f32.mxu0 1.0
    %321 = vmatmul.mubr.f32.gmra.mrb[0].mxu0 1.0
    %v322 = vpop.f32.mrb[0].mxu0
    %v323 = vadd.f32 0.0, %v322
    %v324 = vpop.f32.mrb[0].mxu0
    %325 = vdwg.mxu0
    %v326 = vmul.f32 %v323, 0.00390625
    %v327 = vlog2.pop %v326
    %v328 = vmul.f32 %v327, 0.6931472
    %v329 = vstv %s255
    %v330 = vmul.f32 %v328, %v329
    %v331 = vmul.f32 %v330, 1.442695
    %v332 = vpow.pop %v331
    %333 = vst [vmem:[#allocation6] sm:$0x1] %v332
    // Predicated region
    $region14: #{tpu_custom_call.1} parent=1 // pred_check
      _
    $region15: #{tpu_custom_call.1} parent=1 // pred_check_branch
      %335 = sbr.rel (0) target = $region17
    $region16: #{tpu_custom_call.1} parent=1 // pred_region
      %s337 = ssub.s32 16, 16
      %338 = vsyncadd [#allocation5], %s337
      %s340 = sshll.u32 [#allocation6], 4
      %s341 = int_to_ptr.vmem [resolvable:$true] %s340
      %343 = dma.vmem_to_hbm [thread:$0]  %s341, 16, %s2, [#allocation5]
    $region17: #{tpu_custom_call.1} parent=1 // pred_fallthru
      _
    // Predicated region
    $region18: #{tpu_custom_call.1} parent=1 // pred_check
      _
    $region19: #{tpu_custom_call.1} parent=1 // pred_check_branch
      %345 = sbr.rel (0) target = $region21
    $region20: #{tpu_custom_call.1} parent=1 // pred_region
      %346 = dma.done [#allocation5], 16
    $region21: #{tpu_custom_call.1} parent=1 // pred_fallthru
      _
    %347 = vsyncpa [#allocation4], 1
    %348 = vsyncpa [#allocation5], 1

</llo_original>
